<compile_context>
chip_gen: v6e
topology: v6e:2x2x1
jax: 0.10.0
libtpu: 0.0.40
codegen_flags: <defaults>
</compile_context>

<pallas_src>
import functools

import jax
import jax.numpy as jnp
from jax import lax
from jax.experimental import pallas as pl
from jax.experimental.pallas import tpu as pltpu


_MiB = 1024 * 1024
# VMEM spent on tiles (double-buffered inputs/outputs + accumulator).  Kept
# well under v7x's 64 MiB physical so the defaults run on all generations.
_VMEM_TILE_BUDGET = 40 * _MiB
# Explicit scoped-VMEM limit cap: leaves headroom for Mosaic internal scratch
# on v7x while still raising v5e's 16 MiB default.
_VMEM_LIMIT_CAP = 48 * _MiB
# Max VMEM (double-buffered) for keeping a whole (tm, Kp) x row panel resident.
_X_PANEL_BUDGET = 12 * _MiB


def _round_up(a: int, b: int) -> int:
    return ((a + b - 1) // b) * b


def _pick_tile(extent: int, target: int, gran: int, mxu: int = 256,
               max_pad_frac: float = 0.09):
    """Pick (tile, padded_extent) for one dimension.

    `extent` must already be a multiple of the hardware granularity `gran`
    (8 sublane / 128 lane).  Returns the largest tile <= target whose induced
    padding is small (<= max_pad_frac), scanning MXU-width (256) multiples
    first so mid/large problems feed full 256-wide MXU passes on v6e/v7x and
    falling back to `gran` multiples.  Guarantees tile % gran == 0 and
    padded_extent % tile == 0 (so no in-kernel edge masking is needed).
    """
    if extent <= target:
        return extent, extent            # single full-extent tile, zero extra pad
    steps = (mxu, gran) if mxu > gran else (gran,)
    for step in steps:
        t = (target // step) * step
        while t >= step:
            padded = _round_up(extent, t)
            if padded - extent <= max_pad_frac * extent:
                return t, padded
            t -= step
    return gran, extent                  # extent is a multiple of gran -> zero pad


def _make_kernel(tk: int, x_is_panel: bool, direct_out: bool):
    """Build the kernel body for one configuration.

    x_is_panel : x_ref holds a (tm, Kp) K-resident row panel; slice the
                 k-chunk in-kernel.
    direct_out : out dtype is f32 -> accumulate straight into the VMEM-resident
                 output block (no scratch accumulator, no final astype copy).
    """
    def kernel(x_ref, y_ref, o_ref, *scratch):
        k = pl.program_id(2)

        if x_is_panel:
            x_blk = x_ref[:, pl.ds(pl.multiple_of(k * tk, 128), tk)]
        else:
            x_blk = x_ref[...]

        # o = x @ y.T : contract the last axis of both tiles.  This is the
        # MXU's transposed-RHS feed; no transpose is materialized in VMEM.
        part = lax.dot_general(
            x_blk, y_ref[...],
            dimension_numbers=(((1,), (1,)), ((), ())),
            preferred_element_type=jnp.float32,
        )

        if direct_out:
            @pl.when(k == 0)
            def _():
                o_ref[...] = part            # write, not +=, at k==0

            @pl.when(k > 0)
            def _():
                o_ref[...] += part
        else:
            acc_ref, = scratch

            @pl.when(k == 0)
            def _():
                acc_ref[...] = part

            @pl.when(k > 0)
            def _():
                acc_ref[...] += part

            @pl.when(k == pl.num_programs(2) - 1)
            def _():
                o_ref[...] = acc_ref[...].astype(o_ref.dtype)

    return kernel


@functools.partial(jax.jit, static_argnames=("tm", "tn", "tk", "cast_to_bf16"))
def sample_kernel_forward(
    x: jax.Array,
    y: jax.Array,
    *,
    tm: int = 512,
    tn: int = 512,
    tk: int = 512,
    cast_to_bf16: bool = False,
) -> jax.Array:
    """Pallas equivalent of SampleKernel.forward: torch.matmul(x, y.T).

    x: (M, K), y: (N, K)  ->  (M, N)

    Set cast_to_bf16=True whenever f32 bit-exactness is not required: bf16
    inputs with f32 accumulation give ~2-4x MXU throughput on v6e/v7x and
    halve the input HBM traffic.  Default is False to preserve the module's
    f32 semantics exactly.
    """
    assert x.ndim == 2 and y.ndim == 2, "expected 2-D inputs"
    M, K = x.shape
    N, Ky = y.shape
    assert K == Ky, f"inner dims must match: {K} vs {Ky}"
    assert tm >= 8 and tn >= 128 and tk >= 128, (
        "tile targets must be >= hardware granularity (tm>=8, tn>=128, tk>=128)")

    out_dtype = jnp.result_type(x.dtype, y.dtype)
    direct_out = out_dtype == jnp.float32   # accumulate directly into o_ref

    if cast_to_bf16:
        x = x.astype(jnp.bfloat16)
        y = y.astype(jnp.bfloat16)
    elt = jnp.dtype(x.dtype).itemsize
    out_elt = jnp.dtype(out_dtype).itemsize

    # Hardware-granularity padding first (8 sublanes / 128 lanes), then pick
    # tiles that divide the padded extents; avoids the old pad-to-tile blow-up
    # (K=520 no longer pads to 1024, N=260 no longer pads to 512).
    Mp0 = _round_up(M, 8)
    Np0 = _round_up(N, 128)
    Kp0 = _round_up(K, 128)

    tm, Mp = _pick_tile(Mp0, tm, 8)
    tn, Np = _pick_tile(Np0, tn, 128)
    tk, Kp = _pick_tile(Kp0, tk, 128)

    def vmem_bytes(tm_, tn_, tk_, panel):
        x_b = 2 * tm_ * (Kp if panel else tk_) * elt      # double-buffered
        y_b = 2 * tn_ * tk_ * elt                         # double-buffered
        o_b = 2 * tm_ * tn_ * out_elt                     # double-buffered
        acc_b = 0 if direct_out else tm_ * tn_ * 4
        return x_b + y_b + o_b + acc_b

    # If user-supplied tiles blow the VMEM budget, shrink tk first (it does
    # not change HBM reuse, only per-step overhead), then tn, then tm.
    while vmem_bytes(tm, tn, tk, False) > _VMEM_TILE_BUDGET:
        if tk > 128:
            tk, Kp = _pick_tile(Kp0, max(128, tk // 2), 128)
        elif tn > 128:
            tn, Np = _pick_tile(Np0, max(128, tn // 2), 128)
        elif tm > 8:
            tm, Mp = _pick_tile(Mp0, max(8, tm // 2), 8)
        else:
            break

    # K-resident x row panel: eliminates the (Np/tn)-fold HBM re-read of x.
    # Only worth it when there are multiple N tiles and multiple K steps, and
    # the panel fits a small VMEM budget.
    x_panel = (
        Kp > tk
        and Np > tn
        and 2 * tm * Kp * elt <= _X_PANEL_BUDGET
        and vmem_bytes(tm, tn, tk, True) <= _VMEM_TILE_BUDGET
    )

    # Zero-pad to the chosen (tile-divisible) extents: no ragged-edge masking,
    # and the K accumulation stays exact (padded zeros contribute nothing).
    if (Mp, Kp) != (M, K):
        x = jnp.pad(x, ((0, Mp - M), (0, Kp - K)))
    if (Np, Kp) != (N, K):
        y = jnp.pad(y, ((0, Np - N), (0, Kp - K)))

    grid = (Mp // tm, Np // tn, Kp // tk)   # reduction axis (K) last

    if x_panel:
        x_spec = pl.BlockSpec((tm, Kp), lambda i, j, k: (i, 0))
    else:
        x_spec = pl.BlockSpec((tm, tk), lambda i, j, k: (i, k))
    y_spec = pl.BlockSpec((tn, tk), lambda i, j, k: (j, k))   # row-major, un-transposed
    out_spec = pl.BlockSpec((tm, tn), lambda i, j, k: (i, j))

    # Advisory cost estimate reflecting the actual input re-reads.
    x_reads = 1 if (x_panel or Kp == tk) else Np // tn
    y_reads = Mp // tm
    cost = pl.CostEstimate(
        flops=2 * M * N * K,
        transcendentals=0,
        bytes_accessed=(Mp * Kp * x_reads * elt
                        + Np * Kp * y_reads * elt
                        + Mp * Np * out_elt),
    )

    est = vmem_bytes(tm, tn, tk, x_panel)
    vmem_limit = int(min(_VMEM_LIMIT_CAP, max(32 * _MiB, est + 8 * _MiB)))

    scratch_shapes = [] if direct_out else [pltpu.VMEM((tm, tn), jnp.float32)]

    out = pl.pallas_call(
        _make_kernel(tk, x_panel, direct_out),
        out_shape=jax.ShapeDtypeStruct((Mp, Np), out_dtype),
        grid_spec=pltpu.PrefetchScalarGridSpec(
            num_scalar_prefetch=0,
            grid=grid,
            in_specs=[x_spec, y_spec],
            out_specs=out_spec,
            scratch_shapes=scratch_shapes,
        ),
        compiler_params=pltpu.CompilerParams(
            dimension_semantics=("parallel", "parallel", "arbitrary"),
            vmem_limit_bytes=vmem_limit,
        ),
        cost_estimate=cost,
    )(x, y)

    if (Mp, Np) != (M, N):
        out = out[:M, :N]
    return out


if __name__ == "__main__":
    key = jax.random.PRNGKey(0)
    kx, ky = jax.random.split(key)

    # --- small shapes consistent with the module's forward: x (M,K), y (N,K)
    M, N, K = 8, 16, 32
    x = jax.random.normal(kx, (M, K), dtype=jnp.float32)
    y = jax.random.normal(ky, (N, K), dtype=jnp.float32)
    out = jax.block_until_ready(sample_kernel_forward(x, y))
    ref = x @ y.T
    assert out.shape == (M, N)
    assert jnp.allclose(out, ref, atol=1e-5, rtol=1e-5), "small-shape mismatch"

    # --- awkward, non-multiple shapes: exercises hardware-granularity padding
    # (K=520 -> 640 with tk=128, not 1024), multi-step K accumulation directly
    # into the output block, and the parallel M/N grid axes.
    M2, N2, K2 = 384, 260, 520
    x2 = jax.random.normal(kx, (M2, K2), dtype=jnp.float32)
    y2 = jax.random.normal(ky, (N2, K2), dtype=jnp.float32)
    out2 = jax.block_until_ready(sample_kernel_forward(x2, y2))
    ref2 = x2 @ y2.T
    assert out2.shape == (M2, N2)
    assert jnp.allclose(out2, ref2, atol=1e-2, rtol=1e-2), "tiled-path mismatch"

    # --- shape with multiple N tiles and multiple K steps: exercises the
    # K-resident x row-panel path (x read once from HBM per M row block).
    M3, N3, K3 = 256, 768, 768
    x3 = jax.random.normal(kx, (M3, K3), dtype=jnp.float32)
    y3 = jax.random.normal(ky, (N3, K3), dtype=jnp.float32)
    out3 = jax.block_until_ready(sample_kernel_forward(x3, y3))
    ref3 = x3 @ y3.T
    assert out3.shape == (M3, N3)
    assert jnp.allclose(out3, ref3, atol=1e-2, rtol=1e-2), "panel-path mismatch"

    print("KERNEL_OK")
</pallas_src>

<mosaic_0001>
module attributes {stable_mosaic.version = 11 : i64} {
  func.func @kernel(%arg0: i32, %arg1: i32, %arg2: i32, %arg3: memref<8x128xf32, #tpu.memory_space<vmem>>, %arg4: memref<128x128xf32, #tpu.memory_space<vmem>>, %arg5: memref<8x128xf32, #tpu.memory_space<vmem>>) attributes {dimension_semantics = [#tpu.dimension_semantics<parallel>, #tpu.dimension_semantics<parallel>, #tpu.dimension_semantics<arbitrary>], iteration_bounds = array<i64: 1, 1, 1>, scalar_prefetch = 0 : i64, scratch_operands = 0 : i64, tpu.core_type = #tpu.core_type<tc>, window_params = [{transform_indices = @transform_0, window_bounds = array<i64: 8, 128>}, {transform_indices = @transform_1, window_bounds = array<i64: 128, 128>}, {transform_indices = @transform_2, window_bounds = array<i64: 8, 128>}]} {
    %c0 = arith.constant 0 : index
    %c0_0 = arith.constant 0 : index
    %0 = vector.load %arg3[%c0, %c0_0] : memref<8x128xf32, #tpu.memory_space<vmem>>, vector<8x128xf32>
    %c0_1 = arith.constant 0 : index
    %c0_2 = arith.constant 0 : index
    %1 = vector.load %arg4[%c0_1, %c0_2] : memref<128x128xf32, #tpu.memory_space<vmem>>, vector<128x128xf32>
    %cst = arith.constant dense<0.000000e+00> : vector<8x128xf32>
    %2 = tpu.matmul %0, %1, %cst {dimension_numbers = #tpu.dot_dimension_numbers<[1], [1], [0], [0], [0, 0, 1, 0], [], []>} : vector<8x128xf32>, vector<128x128xf32>, vector<8x128xf32> -> vector<8x128xf32>
    %c0_i32 = arith.constant 0 : i32
    %3 = arith.cmpi eq, %arg2, %c0_i32 : i32
    %4 = arith.extui %3 : i1 to i32
    %c0_i32_3 = arith.constant 0 : i32
    %5 = arith.cmpi ne, %4, %c0_i32_3 : i32
    scf.if %5 {
      %c0_6 = arith.constant 0 : index
      %c0_7 = arith.constant 0 : index
      %9 = vector.load %arg5[%c0_6, %c0_7] : memref<8x128xf32, #tpu.memory_space<vmem>>, vector<8x128xf32>
      tpu.vector_store %arg5[%c0_6, %c0_7], %2 {strides = array<i32>} : memref<8x128xf32, #tpu.memory_space<vmem>>, vector<8x128xf32>,
    } else {
    }
    %c0_i32_4 = arith.constant 0 : i32
    %6 = arith.cmpi sgt, %arg2, %c0_i32_4 : i32
    %7 = arith.extui %6 : i1 to i32
    %c0_i32_5 = arith.constant 0 : i32
    %8 = arith.cmpi ne, %7, %c0_i32_5 : i32
    scf.if %8 {
      %c0_6 = arith.constant 0 : index
      %c0_7 = arith.constant 0 : index
      %9 = vector.load %arg5[%c0_6, %c0_7] : memref<8x128xf32, #tpu.memory_space<vmem>>, vector<8x128xf32>
      %10 = arith.addf %9, %2 : vector<8x128xf32>
      %c0_8 = arith.constant 0 : index
      %c0_9 = arith.constant 0 : index
      %11 = vector.load %arg5[%c0_8, %c0_9] : memref<8x128xf32, #tpu.memory_space<vmem>>, vector<8x128xf32>
      tpu.vector_store %arg5[%c0_8, %c0_9], %10 {strides = array<i32>} : memref<8x128xf32, #tpu.memory_space<vmem>>, vector<8x128xf32>,
    } else {
    }
    return
  }
  func.func @transform_0(%arg0: i32, %arg1: i32, %arg2: i32) -> (i32, i32) {
    %c0_i32 = arith.constant 0 : i32
    return %arg0, %arg2 : i32, i32
  }
  func.func @transform_1(%arg0: i32, %arg1: i32, %arg2: i32) -> (i32, i32) {
    %c0_i32 = arith.constant 0 : i32
    return %arg1, %arg2 : i32, i32
  }
  func.func @transform_2(%arg0: i32, %arg1: i32, %arg2: i32) -> (i32, i32) {
    %c0_i32 = arith.constant 0 : i32
    return %arg0, %arg1 : i32, i32
  }
}

</mosaic_0001>

<llo_original>
// kernel: sample_kernel_forward.1
$region0: #{sample_kernel_forward.1}
  #allocation0 [shape = 'u32[]', space=smem, size = 0x4, offset = 0x4, fixed_abs, tag = 'smem constant byte address 0x4 - core index']
  #allocation1 [shape = 'u32[144,128]{1,0:T(1,128)}', space=vmem, size = 0x12000, scoped, tag = 'internal scratch']
  %s0 = inlined_call_operand.vmem [shape: f32[8,128], index: 0, kind: input, shape index: {}]
  %s1 = inlined_call_operand.vmem [shape: f32[128,128], index: 1, kind: input, shape index: {}]
  %s2 = inlined_call_operand.hbm [shape: f32[8,128], index: 2, kind: output, shape index: {}]
  %s3 = sld [smem:[#allocation0]]
  $region26: #{sample_kernel_forward.1} parent=0
    _
  %s5 = ssub.s32 1, %s3
  %s6 = scalar_select 0, %s5, %s3
  $region1: #{sample_kernel_forward.1} parent=0
    #allocation2 [shape = 'u8[4096]{0}', space=vmem, size = 0x1000, scoped, tag = 'output window, operand 0, single buffered']
    #allocation3 [shape = 's32[1]{0}', space=sflag, size = 0x4, scoped, tag = 'scoped memory for sample_kernel_forward.1']
    %7 = vsyncpa [#allocation3], 0
    // Predicated region
    $region2: #{sample_kernel_forward.1} parent=1 // pred_check
      _
    $region3: #{sample_kernel_forward.1} parent=1 // pred_check_branch
      %9 = sbr.rel (0) target = $region5
    $region4: #{sample_kernel_forward.1} parent=1 // pred_region
      _
    $region5: #{sample_kernel_forward.1} parent=1 // pred_fallthru
      _
    // Predicated region
    $region6: #{sample_kernel_forward.1} parent=1 // pred_check
      _
    $region7: #{sample_kernel_forward.1} parent=1 // pred_check_branch
      %11 = sbr.rel (0) target = $region9
    $region8: #{sample_kernel_forward.1} parent=1 // pred_region
      _
    $region9: #{sample_kernel_forward.1} parent=1 // pred_fallthru
      _
    %v12 = vld [vmem:[%s0] sm:$0xff]
    %v13 = vld [vmem:[%s1] sm:$0xff]
    %v14 = vld [vmem:[%s1 + $0x8] sm:$0xff]
    %v15 = vld [vmem:[%s1 + $0x10] sm:$0xff]
    %v16 = vld [vmem:[%s1 + $0x18] sm:$0xff]
    %v17 = vld [vmem:[%s1 + $0x20] sm:$0xff]
    %v18 = vld [vmem:[%s1 + $0x28] sm:$0xff]
    %v19 = vld [vmem:[%s1 + $0x30] sm:$0xff]
    %v20 = vld [vmem:[%s1 + $0x38] sm:$0xff]
    %v21 = vld [vmem:[%s1 + $0x40] sm:$0xff]
    %v22 = vld [vmem:[%s1 + $0x48] sm:$0xff]
    %v23 = vld [vmem:[%s1 + $0x50] sm:$0xff]
    %v24 = vld [vmem:[%s1 + $0x58] sm:$0xff]
    %v25 = vld [vmem:[%s1 + $0x60] sm:$0xff]
    %v26 = vld [vmem:[%s1 + $0x68] sm:$0xff]
    %v27 = vld [vmem:[%s1 + $0x70] sm:$0xff]
    %v28 = vld [vmem:[%s1 + $0x78] sm:$0xff]
    %29 = vmatprep.subr.mxu0 0.0
    %30 = vmatpush1.xpose.msra.mxu0 %v28
    %31 = vmatprep.subr.mxu0 0.0
    %32 = vmatpush1.xpose.msra.mxu0 %v27
    %33 = vmatprep.subr.mxu0 0.0
    %34 = vmatpush1.xpose.msra.mxu0 %v26
    %35 = vmatprep.subr.mxu0 0.0
    %36 = vmatpush1.xpose.msra.mxu0 %v25
    %37 = vmatprep.subr.mxu0 0.0
    %38 = vmatpush1.xpose.msra.mxu0 %v24
    %39 = vmatprep.subr.mxu0 0.0
    %40 = vmatpush1.xpose.msra.mxu0 %v23
    %41 = vmatprep.subr.mxu0 0.0
    %42 = vmatpush1.xpose.msra.mxu0 %v22
    %43 = vmatprep.subr.mxu0 0.0
    %44 = vmatpush1.xpose.msra.mxu0 %v21
    %45 = vmatprep.subr.mxu0 0.0
    %46 = vmatpush1.xpose.msra.mxu0 %v20
    %47 = vmatprep.subr.mxu0 0.0
    %48 = vmatpush1.xpose.msra.mxu0 %v19
    %49 = vmatprep.subr.mxu0 0.0
    %50 = vmatpush1.xpose.msra.mxu0 %v18
    %51 = vmatprep.subr.mxu0 0.0
    %52 = vmatpush1.xpose.msra.mxu0 %v17
    %53 = vmatprep.subr.mxu0 0.0
    %54 = vmatpush1.xpose.msra.mxu0 %v16
    %55 = vmatprep.subr.mxu0 0.0
    %56 = vmatpush1.xpose.msra.mxu0 %v15
    %57 = vmatprep.subr.mxu0 0.0
    %58 = vmatpush1.xpose.msra.mxu0 %v14
    %59 = vmatprep.subr.mxu0 0.0
    %60 = vmatpush1.xpose.msra.mxu0 %v13
    %61 = vmatprep.subr.mxu0 0.0
    %62 = vmatpush2.xpose.msra.mxu0 0.0
    %63 = vmatprep.subr.mxu0 0.0
    %64 = vmatpush2.xpose.msra.mxu0 0.0
    %65 = vmatprep.subr.mxu0 0.0
    %66 = vmatpush2.xpose.msra.mxu0 0.0
    %67 = vmatprep.subr.mxu0 0.0
    %68 = vmatpush2.xpose.msra.mxu0 0.0
    %69 = vmatprep.subr.mxu0 0.0
    %70 = vmatpush2.xpose.msra.mxu0 0.0
    %71 = vmatprep.subr.mxu0 0.0
    %72 = vmatpush2.xpose.msra.mxu0 0.0
    %73 = vmatprep.subr.mxu0 0.0
    %74 = vmatpush2.xpose.msra.mxu0 0.0
    %75 = vmatprep.subr.mxu0 0.0
    %76 = vmatpush2.xpose.msra.mxu0 0.0
    %77 = vmatprep.subr.mxu0 0.0
    %78 = vmatpush2.xpose.msra.mxu0 0.0
    %79 = vmatprep.subr.mxu0 0.0
    %80 = vmatpush2.xpose.msra.mxu0 0.0
    %81 = vmatprep.subr.mxu0 0.0
    %82 = vmatpush2.xpose.msra.mxu0 0.0
    %83 = vmatprep.subr.mxu0 0.0
    %84 = vmatpush2.xpose.msra.mxu0 0.0
    %85 = vmatprep.subr.mxu0 0.0
    %86 = vmatpush2.xpose.msra.mxu0 0.0
    %87 = vmatprep.subr.mxu0 0.0
    %88 = vmatpush2.xpose.msra.mxu0 0.0
    %89 = vmatprep.subr.mxu0 0.0
    %90 = vmatpush2.xpose.msra.mxu0 0.0
    %91 = vmatprep.subr.mxu0 0.0
    %92 = vmatpush2.xpose.msra.mxu0 0.0
    %93 = vmatprep.mubr.f32.mxu0 0.0
    %94 = vmatmul.mubr.f32.gmra.mxu0 %v12
    %v95 = vpop.f32.mrf.mxu0
    %v96 = vadd.f32 0.0, %v95
    %v97 = vpop.f32.mrf.mxu0
    %98 = vdwg.mxu0
    %p99 = scmp.eq.s32.totalorder 0, 0
    // Predicated region
    $region10: #{sample_kernel_forward.1} parent=1 // pred_check
      %p100 = pneg %p99
    $region11: #{sample_kernel_forward.1} parent=1 // pred_check_branch
      %102 = sbr.rel (%p100) target = $region13
    $region12: #{sample_kernel_forward.1} parent=1 // pred_region
      %103 = vst [vmem:[#allocation2] sm:$0xff] %v96
    $region13: #{sample_kernel_forward.1} parent=1 // pred_fallthru
      _
    %p104 = scmp.gt.s32.totalorder 0, 0
    // Predicated region
    $region14: #{sample_kernel_forward.1} parent=1 // pred_check
      %p105 = pneg %p104
    $region15: #{sample_kernel_forward.1} parent=1 // pred_check_branch
      %107 = sbr.rel (%p105) target = $region17
    $region16: #{sample_kernel_forward.1} parent=1 // pred_region
      %v108 = vld [vmem:[#allocation2] sm:$0xff]
      %v109 = vadd.f32 %v108, %v96
      %110 = vst [vmem:[#allocation2] sm:$0xff] %v109
    $region17: #{sample_kernel_forward.1} parent=1 // pred_fallthru
      _
    // Predicated region
    $region18: #{sample_kernel_forward.1} parent=1 // pred_check
      _
    $region19: #{sample_kernel_forward.1} parent=1 // pred_check_branch
      %112 = sbr.rel (0) target = $region21
    $region20: #{sample_kernel_forward.1} parent=1 // pred_region
      %s114 = ssub.s32 128, 128
      %115 = vsyncadd [#allocation3], %s114
      %s117 = sshll.u32 [#allocation2], 4
      %s118 = int_to_ptr.vmem [resolvable:$true] %s117
      %120 = dma.vmem_to_hbm [thread:$0]  %s118, 128, %s2, [#allocation3]
    $region21: #{sample_kernel_forward.1} parent=1 // pred_fallthru
      _
    // Predicated region
    $region22: #{sample_kernel_forward.1} parent=1 // pred_check
      _
    $region23: #{sample_kernel_forward.1} parent=1 // pred_check_branch
      %122 = sbr.rel (0) target = $region25
    $region24: #{sample_kernel_forward.1} parent=1 // pred_region
      %123 = dma.done [#allocation3], 128
    $region25: #{sample_kernel_forward.1} parent=1 // pred_fallthru
      _
    %124 = vsyncpa [#allocation3], 1

</llo_original>
